<compile_context>
chip_gen: v7x
topology: tpu7x:2x2x1
jax: 0.10.0
libtpu: 0.0.40
codegen_flags: <defaults>
</compile_context>

<pallas_src>
import jax
import jax.numpy as jnp
from jax.experimental import pallas as pl
from jax.experimental.pallas import tpu as pltpu


def mlp_embed_kernel(x_ref, w1_ref, b1_ref, w2_ref, b2_ref, o_ref):
    # hidden = relu(x @ W1 + b1)   (MXU matmul, f32 accumulation)
    h = jnp.dot(x_ref[...], w1_ref[...], preferred_element_type=jnp.float32)
    h = jnp.maximum(h + b1_ref[...], 0.0)              # (tb, H) + (1, H) broadcast
    # y = h @ W2 + b2  -- cast h back to the weight dtype so the second matmul
    # also runs in bf16 on the MXU when enabled (no-op in the f32 path).
    y = jnp.dot(h.astype(w2_ref.dtype), w2_ref[...],
                preferred_element_type=jnp.float32)
    y = y + b2_ref[...]                                 # (tb, Dout) + (1, Dout)
    # L2 normalize along the feature axis: rsqrt on the EUP + VPU multiply
    # (replaces sqrt + divide on the VALU critical path).
    sumsq = jnp.sum(y * y, axis=1, keepdims=True)
    o_ref[...] = (y * jax.lax.rsqrt(sumsq)).astype(o_ref.dtype)


def _round_up(n, m):
    return ((n + m - 1) // m) * m


def mlp_embed(x, w1, b1, w2, b2, *, tile_b=128, use_bf16=True):
    """x: (B, C, H, W) or any (B, ...) -> (B, Dout) float32, L2-normalized rows."""
    B = x.shape[0]
    xf = x.reshape(B, -1).astype(jnp.float32)           # flatten (wrapper glue)
    Din = xf.shape[1]
    H = w1.shape[1]
    Dout = w2.shape[1]

    # Effective batch tile: as large as tile_b but never larger than the
    # (8-rounded) batch.  Pad B up to a tile multiple instead of asserting.
    tb = min(tile_b, _round_up(B, 8))
    B_pad = _round_up(B, tb)
    if B_pad > B:
        xf = jnp.pad(xf, ((0, B_pad - B), (0, 0)))
    grid = (B_pad // tb,)

    compute_dtype = jnp.bfloat16 if use_bf16 else jnp.float32
    itemsize = 2 if use_bf16 else 4
    xq = xf.astype(compute_dtype)
    w1q = w1.astype(compute_dtype)
    w2q = w2.astype(compute_dtype)
    b1_2d = b1.reshape(1, H).astype(jnp.float32)
    b2_2d = b2.reshape(1, Dout).astype(jnp.float32)

    # Advisory cost estimate for the XLA scheduler.
    flops = 2 * B_pad * Din * H + 2 * B_pad * H * Dout + 4 * B_pad * Dout
    bytes_accessed = (B_pad * Din * itemsize
                      + (Din * H + H * Dout) * itemsize
                      + (H + Dout) * 4
                      + B_pad * Dout * 4)
    cost = pl.CostEstimate(flops=flops, transcendentals=B_pad,
                           bytes_accessed=bytes_accessed)

    # Working set: resident weights + biases + double-buffered x/out tiles +
    # the f32 hidden activation; raise the scoped VMEM limit accordingly
    # (capped below v7x's 64 MiB physical VMEM to leave headroom).
    ws = ((Din * H + H * Dout) * itemsize + (H + Dout) * 4
          + 2 * (tb * Din * itemsize + tb * Dout * 4) + tb * H * 4)
    vmem_limit = int(min(56 * 2 ** 20, max(32 * 2 ** 20, 2 * ws)))

    out = pl.pallas_call(
        mlp_embed_kernel,
        out_shape=jax.ShapeDtypeStruct((B_pad, Dout), jnp.float32),
        grid_spec=pltpu.PrefetchScalarGridSpec(
            num_scalar_prefetch=0,
            grid=grid,
            in_specs=[
                pl.BlockSpec((tb, Din), lambda i: (i, 0)),   # x tile
                pl.BlockSpec((Din, H), lambda i: (0, 0)),    # W1 (resident)
                pl.BlockSpec((1, H), lambda i: (0, 0)),      # b1
                pl.BlockSpec((H, Dout), lambda i: (0, 0)),   # W2 (resident)
                pl.BlockSpec((1, Dout), lambda i: (0, 0)),   # b2
            ],
            out_specs=pl.BlockSpec((tb, Dout), lambda i: (i, 0)),
        ),
        compiler_params=pltpu.CompilerParams(
            dimension_semantics=("parallel",),
            vmem_limit_bytes=vmem_limit,
        ),
        cost_estimate=cost,
    )(xq, w1q, b1_2d, w2q, b2_2d)
    return out[:B]


def reference(x, w1, b1, w2, b2):
    B = x.shape[0]
    xf = x.reshape(B, -1).astype(jnp.float32)
    h = jnp.maximum(xf @ w1 + b1, 0.0)
    y = h @ w2 + b2
    norm = jnp.sqrt(jnp.sum(y * y, axis=1, keepdims=True))
    return y / norm


if __name__ == "__main__":
    # Small shapes consistent with the module: dim_in = C*H*W = 4*8*8 = 256,
    # dim_out = 128 (hidden = 2*dim_out = 256).  B = 200 exercises the
    # 128-row tile, batch padding (200 -> 256) and a 2-step parallel grid.
    B, C, Himg, Wimg = 200, 4, 8, 8
    dim_in = C * Himg * Wimg
    dim_out = 128
    hidden = 2 * dim_out

    key = jax.random.PRNGKey(0)
    kx, k1, kb1, k2, kb2 = jax.random.split(key, 5)

    x = jax.random.normal(kx, (B, C, Himg, Wimg), dtype=jnp.float32)

    # Deterministic init mimicking nn.Linear's U(-1/sqrt(fan_in), 1/sqrt(fan_in))
    bound1 = 1.0 / jnp.sqrt(dim_in)
    w1 = jax.random.uniform(k1, (dim_in, hidden), jnp.float32, -bound1, bound1)
    b1 = jax.random.uniform(kb1, (hidden,), jnp.float32, -bound1, bound1)
    bound2 = 1.0 / jnp.sqrt(hidden)
    w2 = jax.random.uniform(k2, (hidden, dim_out), jnp.float32, -bound2, bound2)
    b2 = jax.random.uniform(kb2, (dim_out,), jnp.float32, -bound2, bound2)

    ref = reference(x, w1, b1, w2, b2)

    # Exact f32 path (strict tolerance).
    out_f32 = jax.block_until_ready(mlp_embed(x, w1, b1, w2, b2, use_bf16=False))
    assert out_f32.shape == (B, dim_out)
    assert jnp.allclose(out_f32, ref, atol=1e-5, rtol=1e-5), "f32 mismatch vs reference"

    # Default bf16-MXU path (f32 accumulation); bf16 input rounding => looser tol.
    out_bf16 = jax.block_until_ready(mlp_embed(x, w1, b1, w2, b2, use_bf16=True))
    assert out_bf16.shape == (B, dim_out)
    assert jnp.allclose(out_bf16, ref, atol=5e-3, rtol=5e-2), "bf16 mismatch vs reference"

    print("KERNEL_OK")
</pallas_src>

<mosaic_0001>
module attributes {stable_mosaic.version = 11 : i64} {
  func.func @mlp_embed_kernel(%arg0: i32, %arg1: memref<128x256xf32, #tpu.memory_space<vmem>>, %arg2: memref<256x256xf32, #tpu.memory_space<vmem>>, %arg3: memref<1x256xf32, #tpu.memory_space<vmem>>, %arg4: memref<256x128xf32, #tpu.memory_space<vmem>>, %arg5: memref<1x128xf32, #tpu.memory_space<vmem>>, %arg6: memref<128x128xf32, #tpu.memory_space<vmem>>) attributes {dimension_semantics = [#tpu.dimension_semantics<parallel>], iteration_bounds = array<i64: 2>, scalar_prefetch = 0 : i64, scratch_operands = 0 : i64, tpu.core_type = #tpu.core_type<tc>, window_params = [{transform_indices = @transform_0, window_bounds = array<i64: 128, 256>}, {pipeline_mode = #tpu.pipeline_mode<synchronous>, transform_indices = @transform_1, window_bounds = array<i64: 256, 256>}, {pipeline_mode = #tpu.pipeline_mode<synchronous>, transform_indices = @transform_2, window_bounds = array<i64: 1, 256>}, {pipeline_mode = #tpu.pipeline_mode<synchronous>, transform_indices = @transform_3, window_bounds = array<i64: 256, 128>}, {pipeline_mode = #tpu.pipeline_mode<synchronous>, transform_indices = @transform_4, window_bounds = array<i64: 1, 128>}, {transform_indices = @transform_5, window_bounds = array<i64: 128, 128>}]} {
    %c0 = arith.constant 0 : index
    %c0_0 = arith.constant 0 : index
    %0 = vector.load %arg1[%c0, %c0_0] : memref<128x256xf32, #tpu.memory_space<vmem>>, vector<128x256xf32>
    %c0_1 = arith.constant 0 : index
    %c0_2 = arith.constant 0 : index
    %1 = vector.load %arg2[%c0_1, %c0_2] : memref<256x256xf32, #tpu.memory_space<vmem>>, vector<256x256xf32>
    %cst = arith.constant dense<0.000000e+00> : vector<128x256xf32>
    %2 = tpu.matmul %0, %1, %cst {dimension_numbers = #tpu.dot_dimension_numbers<[1], [0], [0], [1], [0, 0, 1, 1], [], []>} : vector<128x256xf32>, vector<256x256xf32>, vector<128x256xf32> -> vector<128x256xf32>
    %c0_3 = arith.constant 0 : index
    %c0_4 = arith.constant 0 : index
    %3 = vector.load %arg3[%c0_3, %c0_4] : memref<1x256xf32, #tpu.memory_space<vmem>>, vector<1x256xf32>
    %4 = vector.broadcast %3 : vector<1x256xf32> to vector<128x256xf32>
    %5 = arith.addf %2, %4 : vector<128x256xf32>
    %cst_5 = arith.constant 0.000000e+00 : f32
    %6 = vector.broadcast %cst_5 : f32 to vector<128x256xf32>
    %7 = arith.maximumf %5, %6 : vector<128x256xf32>
    %c0_6 = arith.constant 0 : index
    %c0_7 = arith.constant 0 : index
    %8 = vector.load %arg4[%c0_6, %c0_7] : memref<256x128xf32, #tpu.memory_space<vmem>>, vector<256x128xf32>
    %cst_8 = arith.constant dense<0.000000e+00> : vector<128x128xf32>
    %9 = tpu.matmul %7, %8, %cst_8 {dimension_numbers = #tpu.dot_dimension_numbers<[1], [0], [0], [1], [0, 0, 1, 1], [], []>} : vector<128x256xf32>, vector<256x128xf32>, vector<128x128xf32> -> vector<128x128xf32>
    %c0_9 = arith.constant 0 : index
    %c0_10 = arith.constant 0 : index
    %10 = vector.load %arg5[%c0_9, %c0_10] : memref<1x128xf32, #tpu.memory_space<vmem>>, vector<1x128xf32>
    %11 = vector.broadcast %10 : vector<1x128xf32> to vector<128x128xf32>
    %12 = arith.addf %9, %11 : vector<128x128xf32>
    %13 = arith.mulf %12, %12 : vector<128x128xf32>
    %cst_11 = arith.constant dense<0.000000e+00> : vector<128xf32>
    %14 = vector.multi_reduction <add>, %13, %cst_11 [1] : vector<128x128xf32> to vector<128xf32>
    %15 = vector.shape_cast %14 : vector<128xf32> to vector<128x1xf32>
    %16 = math.rsqrt %15 : vector<128x1xf32>
    %17 = vector.broadcast %16 : vector<128x1xf32> to vector<128x128xf32>
    %18 = arith.mulf %12, %17 : vector<128x128xf32>
    %c0_12 = arith.constant 0 : index
    %c0_13 = arith.constant 0 : index
    %19 = vector.load %arg6[%c0_12, %c0_13] : memref<128x128xf32, #tpu.memory_space<vmem>>, vector<128x128xf32>
    tpu.vector_store %arg6[%c0_12, %c0_13], %18 {strides = array<i32>} : memref<128x128xf32, #tpu.memory_space<vmem>>, vector<128x128xf32>,
    return
  }
  func.func @transform_0(%arg0: i32) -> (i32, i32) {
    %c0_i32 = arith.constant 0 : i32
    %c0_i32_0 = arith.constant 0 : i32
    return %arg0, %c0_i32 : i32, i32
  }
  func.func @transform_1(%arg0: i32) -> (i32, i32) {
    %c0_i32 = arith.constant 0 : i32
    %c0_i32_0 = arith.constant 0 : i32
    %c0_i32_1 = arith.constant 0 : i32
    return %c0_i32, %c0_i32_0 : i32, i32
  }
  func.func @transform_2(%arg0: i32) -> (i32, i32) {
    %c0_i32 = arith.constant 0 : i32
    %c0_i32_0 = arith.constant 0 : i32
    %c0_i32_1 = arith.constant 0 : i32
    return %c0_i32, %c0_i32_0 : i32, i32
  }
  func.func @transform_3(%arg0: i32) -> (i32, i32) {
    %c0_i32 = arith.constant 0 : i32
    %c0_i32_0 = arith.constant 0 : i32
    %c0_i32_1 = arith.constant 0 : i32
    return %c0_i32, %c0_i32_0 : i32, i32
  }
  func.func @transform_4(%arg0: i32) -> (i32, i32) {
    %c0_i32 = arith.constant 0 : i32
    %c0_i32_0 = arith.constant 0 : i32
    %c0_i32_1 = arith.constant 0 : i32
    return %c0_i32, %c0_i32_0 : i32, i32
  }
  func.func @transform_5(%arg0: i32) -> (i32, i32) {
    %c0_i32 = arith.constant 0 : i32
    %c0_i32_0 = arith.constant 0 : i32
    return %arg0, %c0_i32 : i32, i32
  }
}

</mosaic_0001>

<llo_original>
// kernel: tpu_custom_call.1
$region0: #{tpu_custom_call.1}
  #allocation0 [shape = 'u32[]', space=smem, size = 0x4, offset = 0x4, fixed_abs, tag = 'smem constant byte address 0x4 - core index']
  #allocation1 [shape = 'u32[144,128]{1,0:T(1,128)}', space=vmem, size = 0x12000, scoped, tag = 'internal scratch']
  %s0 = inlined_call_operand.hbm [shape: f32[256,256], index: 0, kind: input, shape index: {}]
  %s1 = inlined_call_operand.hbm [shape: f32[256,256], index: 1, kind: input, shape index: {}]
  %s2 = inlined_call_operand.vmem [shape: f32[1,256], index: 2, kind: input, shape index: {}]
  %s3 = inlined_call_operand.hbm [shape: f32[256,128], index: 3, kind: input, shape index: {}]
  %s4 = inlined_call_operand.vmem [shape: f32[1,128], index: 4, kind: input, shape index: {}]
  %s5 = inlined_call_operand.hbm [shape: f32[256,128], index: 5, kind: output, shape index: {}]
  %s6 = sld [smem:[#allocation0]]
  $region65: #{tpu_custom_call.1} parent=0
    _
  %s8 = ssub.s32 1, %s6
  %s9 = scalar_select 0, %s8, %s6
  $region1: #{tpu_custom_call.1} parent=0
    #allocation2 [shape = 'u8[262144]{0}', space=vmem, size = 0x40000, scoped, tag = 'input window, operand 0']
    #allocation3 [shape = 's32[2]{0}', space=sflag, size = 0x8, scoped, tag = 'scoped memory for tpu_custom_call.1']
    #allocation4 [shape = 's32[2]{0}', space=sflag, size = 0x8, scoped, tag = 'scoped memory for tpu_custom_call.1']
    #allocation5 [shape = 'u8[262144]{0}', space=vmem, size = 0x40000, scoped, tag = 'input window, operand 1, single buffered']
    #allocation6 [shape = 's32[1]{0}', space=sflag, size = 0x4, scoped, tag = 'scoped memory for tpu_custom_call.1']
    #allocation7 [shape = 'u8[131072]{0}', space=vmem, size = 0x20000, scoped, tag = 'input window, operand 3, single buffered']
    #allocation8 [shape = 'u8[131072]{0}', space=vmem, size = 0x20000, scoped, tag = 'output window, operand 0']
    %10 = vsyncpa [#allocation3], 0
    %s11 = scalar_lea.sflag [#allocation3], 1
    %12 = vsyncpa %s11, 0
    %13 = vsyncpa [#allocation6], 0
    %14 = vsyncpa [#allocation4], 0
    %s15 = scalar_lea.sflag [#allocation4], 1
    %16 = vsyncpa %s15, 0
    loop: start=0, step=1, limit=4
    $region2: #{tpu_custom_call.1} parent=1 // loop_pre_header
      _
    $region3: #{tpu_custom_call.1} parent=1 // loop_header
      %s18 = sphi 0, %s22
      %p19 = scmp.ge.s32.totalorder %s18, 4
      %s28 = sphi 0, %s30
      %s31 = sphi 0, %s28
      %s32 = sphi 0, %s31
      %s48 = sphi 0, %s32
      %s52 = sphi 0, %s52
      %s54 = sphi 0, %s52
      %s55 = sphi 0, %s54
      %s69 = sphi 0, %s55
      %s73 = sphi 0, %s73
      %s75 = sphi 0, %s73
      %s76 = sphi 0, %s75
      %s90 = sphi 0, %s76
      %s94 = sphi 0, %s94
      %s96 = sphi 0, %s94
      %s97 = sphi 0, %s96
      %s111 = sphi 0, %s97
      %s115 = sphi 0, %s115
      %s117 = sphi 0, %s115
      %s118 = sphi 0, %s117
      %s132 = sphi 0, %s118
      %s138 = sphi 0, %s140
      %s141 = sphi 0, %s138
      %s142 = sphi 0, %s141
      %s158 = sphi 0, %s142
    $region4: #{tpu_custom_call.1} parent=1 // loop_header_branch
      %21 = sbr.rel (%p19) target = $region8
    $region5: #{tpu_custom_call.1} parent=1 // loop_body
      %s23 = ssub.s32 %s18, 1
      %s24 = ssub.s32 %s18, 2
      %s25 = sadd.s32 %s18, 1
      %s26 = ssub.s32 %s18, %s25
      %p27 = scmp.eq.s32.totalorder %s26, 0
      %s29 = sadd.s32 %s28, 1
      %s30 = scalar_select %p27, %s28, %s29
      %p33 = pneg %p27
      %p34 = scmp.eq.s32.totalorder %s18, 1
      %p35 = por %p33, %p34
      %p36 = scmp.ne.s32.totalorder %s28, %s31
      %p37 = scmp.eq.s32.totalorder %s18, 0
      %p38 = por %p36, %p37
      %p39 = scmp.ne.s32.totalorder %s28, %s31
      %p40 = scmp.eq.s32.totalorder %s23, 1
      %p41 = por %p39, %p40
      %p42 = scmp.ne.s32.totalorder %s31, %s32
      %p43 = scmp.eq.s32.totalorder %s23, 0
      %p44 = por %p42, %p43
      %p45 = scmp.ne.s32.totalorder %s31, %s32
      %p46 = scmp.eq.s32.totalorder %s24, 1
      %p47 = por %p45, %p46
      %p49 = scmp.ne.s32.totalorder %s32, %s48
      %p50 = scmp.eq.s32.totalorder %s24, 0
      %p51 = por %p49, %p50
      %s53 = sadd.s32 %s52, 1
      %p56 = scmp.eq.s32.totalorder %s18, 1
      %p57 = scmp.ne.s32.totalorder %s52, %s54
      %p58 = scmp.eq.s32.totalorder %s18, 0
      %p59 = por %p57, %p58
      %p60 = scmp.ne.s32.totalorder %s52, %s54
      %p61 = scmp.eq.s32.totalorder %s23, 1
      %p62 = por %p60, %p61
      %p63 = scmp.ne.s32.totalorder %s54, %s55
      %p64 = scmp.eq.s32.totalorder %s23, 0
      %p65 = por %p63, %p64
      %p66 = scmp.ne.s32.totalorder %s54, %s55
      %p67 = scmp.eq.s32.totalorder %s24, 1
      %p68 = por %p66, %p67
      %p70 = scmp.ne.s32.totalorder %s55, %s69
      %p71 = scmp.eq.s32.totalorder %s24, 0
      %p72 = por %p70, %p71
      %s74 = sadd.s32 %s73, 1
      %p77 = scmp.eq.s32.totalorder %s18, 1
      %p78 = scmp.ne.s32.totalorder %s73, %s75
      %p79 = scmp.eq.s32.totalorder %s18, 0
      %p80 = por %p78, %p79
      %p81 = scmp.ne.s32.totalorder %s73, %s75
      %p82 = scmp.eq.s32.totalorder %s23, 1
      %p83 = por %p81, %p82
      %p84 = scmp.ne.s32.totalorder %s75, %s76
      %p85 = scmp.eq.s32.totalorder %s23, 0
      %p86 = por %p84, %p85
      %p87 = scmp.ne.s32.totalorder %s75, %s76
      %p88 = scmp.eq.s32.totalorder %s24, 1
      %p89 = por %p87, %p88
      %p91 = scmp.ne.s32.totalorder %s76, %s90
      %p92 = scmp.eq.s32.totalorder %s24, 0
      %p93 = por %p91, %p92
      %s95 = sadd.s32 %s94, 1
      %p98 = scmp.eq.s32.totalorder %s18, 1
      %p99 = scmp.ne.s32.totalorder %s94, %s96
      %p100 = scmp.eq.s32.totalorder %s18, 0
      %p101 = por %p99, %p100
      %p102 = scmp.ne.s32.totalorder %s94, %s96
      %p103 = scmp.eq.s32.totalorder %s23, 1
      %p104 = por %p102, %p103
      %p105 = scmp.ne.s32.totalorder %s96, %s97
      %p106 = scmp.eq.s32.totalorder %s23, 0
      %p107 = por %p105, %p106
      %p108 = scmp.ne.s32.totalorder %s96, %s97
      %p109 = scmp.eq.s32.totalorder %s24, 1
      %p110 = por %p108, %p109
      %p112 = scmp.ne.s32.totalorder %s97, %s111
      %p113 = scmp.eq.s32.totalorder %s24, 0
      %p114 = por %p112, %p113
      %s116 = sadd.s32 %s115, 1
      %p119 = scmp.eq.s32.totalorder %s18, 1
      %p120 = scmp.ne.s32.totalorder %s115, %s117
      %p121 = scmp.eq.s32.totalorder %s18, 0
      %p122 = por %p120, %p121
      %p123 = scmp.ne.s32.totalorder %s115, %s117
      %p124 = scmp.eq.s32.totalorder %s23, 1
      %p125 = por %p123, %p124
      %p126 = scmp.ne.s32.totalorder %s117, %s118
      %p127 = scmp.eq.s32.totalorder %s23, 0
      %p128 = por %p126, %p127
      %p129 = scmp.ne.s32.totalorder %s117, %s118
      %p130 = scmp.eq.s32.totalorder %s24, 1
      %p131 = por %p129, %p130
      %p133 = scmp.ne.s32.totalorder %s118, %s132
      %p134 = scmp.eq.s32.totalorder %s24, 0
      %p135 = por %p133, %p134
      %s136 = ssub.s32 %s18, %s25
      %p137 = scmp.eq.s32.totalorder %s136, 0
      %s139 = sadd.s32 %s138, 1
      %s140 = scalar_select %p137, %s138, %s139
      %p143 = pneg %p137
      %p144 = scmp.eq.s32.totalorder %s18, 1
      %p145 = por %p143, %p144
      %p146 = scmp.ne.s32.totalorder %s138, %s141
      %p147 = scmp.eq.s32.totalorder %s18, 0
      %p148 = por %p146, %p147
      %p149 = scmp.ne.s32.totalorder %s138, %s141
      %p150 = scmp.eq.s32.totalorder %s23, 1
      %p151 = por %p149, %p150
      %p152 = scmp.ne.s32.totalorder %s141, %s142
      %p153 = scmp.eq.s32.totalorder %s23, 0
      %p154 = por %p152, %p153
      %p155 = scmp.ne.s32.totalorder %s141, %s142
      %p156 = scmp.eq.s32.totalorder %s24, 1
      %p157 = por %p155, %p156
      %p159 = scmp.ne.s32.totalorder %s142, %s158
      %p160 = scmp.eq.s32.totalorder %s24, 0
      %p161 = por %p159, %p160
      %p162 = scmp.le.s32.totalorder 1, %s18
      %p163 = scmp.lt.s32.totalorder %s18, 3
      %p164 = pnand %p162, %p163
      %p165 = pneg %p164
      // Predicated region
      $region9: #{tpu_custom_call.1} parent=5 // pred_check
        _
      $region10: #{tpu_custom_call.1} parent=5 // pred_check_branch
        %167 = sbr.rel (%p164) target = $region12
      $region11: #{tpu_custom_call.1} parent=5 // pred_region
        %s168 = ssub.s32 %s18, 1
        // Predicated region
        $region13: #{tpu_custom_call.1} parent=11 // pred_check
          %p169 = pneg %p65
        $region14: #{tpu_custom_call.1} parent=11 // pred_check_branch
          %171 = sbr.rel (%p169) target = $region16
        $region15: #{tpu_custom_call.1} parent=11 // pred_region
          %s173 = ssub.s32 8192, 8192
          %174 = vsyncadd [#allocation6], %s173
          %s175 = sshll.u32 [#allocation5], 4
          %s176 = int_to_ptr.vmem [resolvable:$true] %s175
          %181 = dma.hbm_to_vmem [thread:$0]  %s1, 8192, %s176, [#allocation6], 256, 256, 16
        $region16: #{tpu_custom_call.1} parent=11 // pred_fallthru
          _
        // Predicated region
        $region17: #{tpu_custom_call.1} parent=11 // pred_check
          %p182 = pneg %p86
        $region18: #{tpu_custom_call.1} parent=11 // pred_check_branch
          %184 = sbr.rel (%p182) target = $region20
        $region19: #{tpu_custom_call.1} parent=11 // pred_region
          _
        $region20: #{tpu_custom_call.1} parent=11 // pred_fallthru
          _
        // Predicated region
        $region21: #{tpu_custom_call.1} parent=11 // pred_check
          %p185 = pneg %p107
        $region22: #{tpu_custom_call.1} parent=11 // pred_check_branch
          %187 = sbr.rel (%p185) target = $region24
        $region23: #{tpu_custom_call.1} parent=11 // pred_region
          %s189 = ssub.s32 4096, 4096
          %190 = vsyncadd [#allocation6], %s189
          %s191 = sshll.u32 [#allocation7], 4
          %s192 = int_to_ptr.vmem [resolvable:$true] %s191
          %197 = dma.hbm_to_vmem [thread:$0]  %s3, 4096, %s192, [#allocation6], 128, 128, 8
        $region24: #{tpu_custom_call.1} parent=11 // pred_fallthru
          _
        // Predicated region
        $region25: #{tpu_custom_call.1} parent=11 // pred_check
          %p198 = pneg %p128
        $region26: #{tpu_custom_call.1} parent=11 // pred_check_branch
          %200 = sbr.rel (%p198) target = $region28
        $region27: #{tpu_custom_call.1} parent=11 // pred_region
          _
        $region28: #{tpu_custom_call.1} parent=11 // pred_fallthru
          _
      $region12: #{tpu_custom_call.1} parent=5 // pred_fallthru
        _
      %p201 = scmp.lt.s32.totalorder %s18, 2
      // Predicated region
      $region29: #{tpu_custom_call.1} parent=5 // pred_check
        %p202 = pneg %p201
      $region30: #{tpu_custom_call.1} parent=5 // pred_check_branch
        %204 = sbr.rel (%p202) target = $region32
      $region31: #{tpu_custom_call.1} parent=5 // pred_region
        // Predicated region
        $region33: #{tpu_custom_call.1} parent=31 // pred_check
          %p205 = pneg %p38
        $region34: #{tpu_custom_call.1} parent=31 // pred_check_branch
          %207 = sbr.rel (%p205) target = $region36
        $region35: #{tpu_custom_call.1} parent=31 // pred_region
          %s208 = sand.u32 %s28, 1
          %s209 = scalar_lea.sflag [#allocation3], %s208
          %s210 = sand.u32 %s28, 1
          %s211 = smul.addr %s210, 256
          %s212 = scalar_lea.vmem [#allocation2], %s211
          %s213 = smul.u32 16, %s18
          %s215 = ssub.s32 4096, 4096
          %216 = vsyncadd %s209, %s215
          %s217 = smul.addr %s213, 2
          %s218 = smul.addr %s217, 128
          %s219 = scalar_lea.hbm %s0, %s218
          %s220 = sshll.u32 %s212, 4
          %s221 = int_to_ptr.vmem [resolvable:$true] %s220
          %226 = dma.hbm_to_vmem [thread:$0]  %s219, 4096, %s221, %s209, 256, 256, 16
        $region36: #{tpu_custom_call.1} parent=31 // pred_fallthru
          _
      $region32: #{tpu_custom_call.1} parent=5 // pred_fallthru
        _
      %p227 = scmp.le.s32.totalorder 1, %s18
      %p228 = scmp.lt.s32.totalorder %s18, 3
      %p229 = pnand %p227, %p228
      %p230 = pneg %p229
      // Predicated region
      $region37: #{tpu_custom_call.1} parent=5 // pred_check
        _
      $region38: #{tpu_custom_call.1} parent=5 // pred_check_branch
        %232 = sbr.rel (%p229) target = $region40
      $region39: #{tpu_custom_call.1} parent=5 // pred_region
        %s233 = ssub.s32 %s18, 1
        %s234 = sand.u32 %s31, 1
        %s235 = scalar_lea.sflag [#allocation3], %s234
        %s236 = sand.u32 %s31, 1
        %s237 = smul.addr %s236, 256
        %s238 = scalar_lea.vmem [#allocation2], %s237
        // Predicated region
        $region41: #{tpu_custom_call.1} parent=39 // pred_check
          %p239 = pneg %p44
        $region42: #{tpu_custom_call.1} parent=39 // pred_check_branch
          %241 = sbr.rel (%p239) target = $region44
        $region43: #{tpu_custom_call.1} parent=39 // pred_region
          %242 = dma.done %s235, 4096
        $region44: #{tpu_custom_call.1} parent=39 // pred_fallthru
          _
        // Predicated region
        $region45: #{tpu_custom_call.1} parent=39 // pred_check
          %p243 = pneg %p65
        $region46: #{tpu_custom_call.1} parent=39 // pred_check_branch
          %245 = sbr.rel (%p243) target = $region48
        $region47: #{tpu_custom_call.1} parent=39 // pred_region
          %246 = dma.done [#allocation6], 8192
        $region48: #{tpu_custom_call.1} parent=39 // pred_fallthru
          _
        // Predicated region
        $region49: #{tpu_custom_call.1} parent=39 // pred_check
          %p247 = pneg %p107
        $region50: #{tpu_custom_call.1} parent=39 // pred_check_branch
          %249 = sbr.rel (%p247) target = $region52
        $region51: #{tpu_custom_call.1} parent=39 // pred_region
          %250 = dma.done [#allocation6], 4096
        $region52: #{tpu_custom_call.1} parent=39 // pred_fallthru
          _
        %s251 = sand.u32 %s31, 1
        %s252 = scalar_lea.sflag [#allocation3], %s251
        %s253 = sand.u32 %s31, 1
        %s254 = smul.addr %s253, 256
        %s255 = scalar_lea.vmem [#allocation2], %s254
        %p256 = pneg %p44
        %p257 = pneg %p41
        %p258 = pneg %p65
        %p259 = pneg %p62
        %p260 = pneg %p86
        %p261 = pneg %p83
        %p262 = pneg %p107
        %p263 = pneg %p104
        %p264 = pneg %p128
        %p265 = pneg %p125
        %p266 = pneg %p154
        %p267 = pneg %p151
        %s268 = sand.u32 %s141, 1
        %s269 = scalar_lea.sflag [#allocation4], %s268
        %s270 = sand.u32 %s141, 1
        %s271 = smul.addr %s270, 128
        %s272 = scalar_lea.vmem [#allocation8], %s271
        %s273 = smul.u32 16, %s23
        %s274 = smul.u32 16, %s23
        %v275 = vld [vmem:[%s238] sm:$0xff]
        %v276 = vld [vmem:[%s238 + $0x8] sm:$0xff]
        %v277 = vld [vmem:[%s238 + $0x10] sm:$0xff]
        %v278 = vld [vmem:[%s238 + $0x18] sm:$0xff]
        %v279 = vld [vmem:[%s238 + $0x20] sm:$0xff]
        %v280 = vld [vmem:[%s238 + $0x28] sm:$0xff]
        %v281 = vld [vmem:[%s238 + $0x30] sm:$0xff]
        %v282 = vld [vmem:[%s238 + $0x38] sm:$0xff]
        %v283 = vld [vmem:[%s238 + $0x40] sm:$0xff]
        %v284 = vld [vmem:[%s238 + $0x48] sm:$0xff]
        %v285 = vld [vmem:[%s238 + $0x50] sm:$0xff]
        %v286 = vld [vmem:[%s238 + $0x58] sm:$0xff]
        %v287 = vld [vmem:[%s238 + $0x60] sm:$0xff]
        %v288 = vld [vmem:[%s238 + $0x68] sm:$0xff]
        %v289 = vld [vmem:[%s238 + $0x70] sm:$0xff]
        %v290 = vld [vmem:[%s238 + $0x78] sm:$0xff]
        %v291 = vld [vmem:[%s238 + $0x80] sm:$0xff]
        %v292 = vld [vmem:[%s238 + $0x88] sm:$0xff]
        %v293 = vld [vmem:[%s238 + $0x90] sm:$0xff]
        %v294 = vld [vmem:[%s238 + $0x98] sm:$0xff]
        %v295 = vld [vmem:[%s238 + $0xa0] sm:$0xff]
        %v296 = vld [vmem:[%s238 + $0xa8] sm:$0xff]
        %v297 = vld [vmem:[%s238 + $0xb0] sm:$0xff]
        %v298 = vld [vmem:[%s238 + $0xb8] sm:$0xff]
        %v299 = vld [vmem:[%s238 + $0xc0] sm:$0xff]
        %v300 = vld [vmem:[%s238 + $0xc8] sm:$0xff]
        %v301 = vld [vmem:[%s238 + $0xd0] sm:$0xff]
        %v302 = vld [vmem:[%s238 + $0xd8] sm:$0xff]
        %v303 = vld [vmem:[%s238 + $0xe0] sm:$0xff]
        %v304 = vld [vmem:[%s238 + $0xe8] sm:$0xff]
        %v305 = vld [vmem:[%s238 + $0xf0] sm:$0xff]
        %v306 = vld [vmem:[%s238 + $0xf8] sm:$0xff]
        %v307 = vld [vmem:[#allocation5] sm:$0xff]
        %v308 = vld [vmem:[#allocation5 + $0x8] sm:$0xff]
        %v309 = vld [vmem:[#allocation5 + $0x10] sm:$0xff]
        %v310 = vld [vmem:[#allocation5 + $0x18] sm:$0xff]
        %v311 = vld [vmem:[#allocation5 + $0x20] sm:$0xff]
        %v312 = vld [vmem:[#allocation5 + $0x28] sm:$0xff]
        %v313 = vld [vmem:[#allocation5 + $0x30] sm:$0xff]
        %v314 = vld [vmem:[#allocation5 + $0x38] sm:$0xff]
        %v315 = vld [vmem:[#allocation5 + $0x40] sm:$0xff]
        %v316 = vld [vmem:[#allocation5 + $0x48] sm:$0xff]
        %v317 = vld [vmem:[#allocation5 + $0x50] sm:$0xff]
        %v318 = vld [vmem:[#allocation5 + $0x58] sm:$0xff]
        %v319 = vld [vmem:[#allocation5 + $0x60] sm:$0xff]
        %v320 = vld [vmem:[#allocation5 + $0x68] sm:$0xff]
        %v321 = vld [vmem:[#allocation5 + $0x70] sm:$0xff]
        %v322 = vld [vmem:[#allocation5 + $0x78] sm:$0xff]
        %v323 = vld [vmem:[#allocation5 + $0x80] sm:$0xff]
        %v324 = vld [vmem:[#allocation5 + $0x88] sm:$0xff]
        %v325 = vld [vmem:[#allocation5 + $0x90] sm:$0xff]
        %v326 = vld [vmem:[#allocation5 + $0x98] sm:$0xff]
        %v327 = vld [vmem:[#allocation5 + $0xa0] sm:$0xff]
        %v328 = vld [vmem:[#allocation5 + $0xa8] sm:$0xff]
        %v329 = vld [vmem:[#allocation5 + $0xb0] sm:$0xff]
        %v330 = vld [vmem:[#allocation5 + $0xb8] sm:$0xff]
        %v331 = vld [vmem:[#allocation5 + $0xc0] sm:$0xff]
        %v332 = vld [vmem:[#allocation5 + $0xc8] sm:$0xff]
        %v333 = vld [vmem:[#allocation5 + $0xd0] sm:$0xff]
        %v334 = vld [vmem:[#allocation5 + $0xd8] sm:$0xff]
        %v335 = vld [vmem:[#allocation5 + $0xe0] sm:$0xff]
        %v336 = vld [vmem:[#allocation5 + $0xe8] sm:$0xff]
        %v337 = vld [vmem:[#allocation5 + $0xf0] sm:$0xff]
        %v338 = vld [vmem:[#allocation5 + $0xf8] sm:$0xff]
        %v339 = vld [vmem:[#allocation5 + $0x100] sm:$0xff]
        %v340 = vld [vmem:[#allocation5 + $0x108] sm:$0xff]
        %v341 = vld [vmem:[#allocation5 + $0x110] sm:$0xff]
        %v342 = vld [vmem:[#allocation5 + $0x118] sm:$0xff]
        %v343 = vld [vmem:[#allocation5 + $0x120] sm:$0xff]
        %v344 = vld [vmem:[#allocation5 + $0x128] sm:$0xff]
        %v345 = vld [vmem:[#allocation5 + $0x130] sm:$0xff]
        %v346 = vld [vmem:[#allocation5 + $0x138] sm:$0xff]
        %v347 = vld [vmem:[#allocation5 + $0x140] sm:$0xff]
        %v348 = vld [vmem:[#allocation5 + $0x148] sm:$0xff]
        %v349 = vld [vmem:[#allocation5 + $0x150] sm:$0xff]
        %v350 = vld [vmem:[#allocation5 + $0x158] sm:$0xff]
        %v351 = vld [vmem:[#allocation5 + $0x160] sm:$0xff]
        %v352 = vld [vmem:[#allocation5 + $0x168] sm:$0xff]
        %v353 = vld [vmem:[#allocation5 + $0x170] sm:$0xff]
        %v354 = vld [vmem:[#allocation5 + $0x178] sm:$0xff]
        %v355 = vld [vmem:[#allocation5 + $0x180] sm:$0xff]
        %v356 = vld [vmem:[#allocation5 + $0x188] sm:$0xff]
        %v357 = vld [vmem:[#allocation5 + $0x190] sm:$0xff]
        %v358 = vld [vmem:[#allocation5 + $0x198] sm:$0xff]
        %v359 = vld [vmem:[#allocation5 + $0x1a0] sm:$0xff]
        %v360 = vld [vmem:[#allocation5 + $0x1a8] sm:$0xff]
        %v361 = vld [vmem:[#allocation5 + $0x1b0] sm:$0xff]
        %v362 = vld [vmem:[#allocation5 + $0x1b8] sm:$0xff]
        %v363 = vld [vmem:[#allocation5 + $0x1c0] sm:$0xff]
        %v364 = vld [vmem:[#allocation5 + $0x1c8] sm:$0xff]
        %v365 = vld [vmem:[#allocation5 + $0x1d0] sm:$0xff]
        %v366 = vld [vmem:[#allocation5 + $0x1d8] sm:$0xff]
        %v367 = vld [vmem:[#allocation5 + $0x1e0] sm:$0xff]
        %v368 = vld [vmem:[#allocation5 + $0x1e8] sm:$0xff]
        %v369 = vld [vmem:[#allocation5 + $0x1f0] sm:$0xff]
        %v370 = vld [vmem:[#allocation5 + $0x1f8] sm:$0xff]
        %v371 = vld [vmem:[%s2] sm:$0x3]
        %v373 = vlaneseq
        %v374 = vshrl.u32 %v373, 7
        %v375 = vsub.s32 0, %v374
        %v376 = vrot.slane %v371, %v375
        %v377 = vlaneseq
        %v378 = vshrl.u32 %v377, 7
        %v379 = vsub.s32 1, %v378
        %v380 = vrot.slane %v371, %v379
        %383 = vmatprep.subr.mxu0 %v308
        %384 = vmatpush1.msra.mxu0 %v307
        %385 = vmatprep.subr.mxu0 %v310
        %386 = vmatpush1.msra.mxu0 %v309
        %387 = vmatprep.subr.mxu0 %v312
        %388 = vmatpush1.msra.mxu0 %v311
        %389 = vmatprep.subr.mxu0 %v314
        %390 = vmatpush1.msra.mxu0 %v313
        %391 = vmatprep.subr.mxu0 %v316
        %392 = vmatpush1.msra.mxu0 %v315
        %393 = vmatprep.subr.mxu0 %v318
        %394 = vmatpush1.msra.mxu0 %v317
        %395 = vmatprep.subr.mxu0 %v320
        %396 = vmatpush1.msra.mxu0 %v319
        %397 = vmatprep.subr.mxu0 %v322
        %398 = vmatpush1.msra.mxu0 %v321
        %399 = vmatprep.subr.mxu0 %v324
        %400 = vmatpush1.msra.mxu0 %v323
        %401 = vmatprep.subr.mxu0 %v326
        %402 = vmatpush1.msra.mxu0 %v325
        %403 = vmatprep.subr.mxu0 %v328
        %404 = vmatpush1.msra.mxu0 %v327
        %405 = vmatprep.subr.mxu0 %v330
        %406 = vmatpush1.msra.mxu0 %v329
        %407 = vmatprep.subr.mxu0 %v332
        %408 = vmatpush1.msra.mxu0 %v331
        %409 = vmatprep.subr.mxu0 %v334
        %410 = vmatpush1.msra.mxu0 %v333
        %411 = vmatprep.subr.mxu0 %v336
        %412 = vmatpush1.msra.mxu0 %v335
        %413 = vmatprep.subr.mxu0 %v338
        %414 = vmatpush1.msra.mxu0 %v337
        %415 = vmatprep.subr.mxu0 %v340
        %416 = vmatpush1.msra.mxu0 %v339
        %417 = vmatprep.subr.mxu0 %v342
        %418 = vmatpush1.msra.mxu0 %v341
        %419 = vmatprep.subr.mxu0 %v344
        %420 = vmatpush1.msra.mxu0 %v343
        %421 = vmatprep.subr.mxu0 %v346
        %422 = vmatpush1.msra.mxu0 %v345
        %423 = vmatprep.subr.mxu0 %v348
        %424 = vmatpush1.msra.mxu0 %v347
        %425 = vmatprep.subr.mxu0 %v350
        %426 = vmatpush1.msra.mxu0 %v349
        %427 = vmatprep.subr.mxu0 %v352
        %428 = vmatpush1.msra.mxu0 %v351
        %429 = vmatprep.subr.mxu0 %v354
        %430 = vmatpush1.msra.mxu0 %v353
        %431 = vmatprep.subr.mxu0 %v356
        %432 = vmatpush1.msra.mxu0 %v355
        %433 = vmatprep.subr.mxu0 %v358
        %434 = vmatpush1.msra.mxu0 %v357
        %435 = vmatprep.subr.mxu0 %v360
        %436 = vmatpush1.msra.mxu0 %v359
        %437 = vmatprep.subr.mxu0 %v362
        %438 = vmatpush1.msra.mxu0 %v361
        %439 = vmatprep.subr.mxu0 %v364
        %440 = vmatpush1.msra.mxu0 %v363
        %441 = vmatprep.subr.mxu0 %v366
        %442 = vmatpush1.msra.mxu0 %v365
        %443 = vmatprep.subr.mxu0 %v368
        %444 = vmatpush1.msra.mxu0 %v367
        %445 = vmatprep.subr.mxu0 %v370
        %446 = vmatpush1.msra.mxu0 %v369
        %447 = vmatprep.mubr.f32.mxu0 %v276
        %448 = vmatmul.mubr.f32.gmra.mrb[0].mxu0 %v275
        %v449 = vpop.f32.mrb[0].mxu0
        %v450 = vadd.f32 %v376, %v449
        %v451 = vpop.f32.mrb[0].mxu0
        %v452 = vadd.f32 %v380, %v451
        %453 = vmatprep.mubr.f32.mxu0 %v278
        %454 = vmatmul.mubr.f32.gmra.mrb[0].mxu0 %v277
        %v455 = vpop.f32.mrb[0].mxu0
        %v456 = vadd.f32 %v376, %v455
        %v457 = vpop.f32.mrb[0].mxu0
        %v458 = vadd.f32 %v380, %v457
        %459 = vmatprep.mubr.f32.mxu0 %v280
        %460 = vmatmul.mubr.f32.gmra.mrb[0].mxu0 %v279
        %v461 = vpop.f32.mrb[0].mxu0
        %v462 = vadd.f32 %v376, %v461
        %v463 = vpop.f32.mrb[0].mxu0
        %v464 = vadd.f32 %v380, %v463
        %465 = vmatprep.mubr.f32.mxu0 %v282
        %466 = vmatmul.mubr.f32.gmra.mrb[0].mxu0 %v281
        %v467 = vpop.f32.mrb[0].mxu0
        %v468 = vadd.f32 %v376, %v467
        %v469 = vpop.f32.mrb[0].mxu0
        %v470 = vadd.f32 %v380, %v469
        %471 = vmatprep.mubr.f32.mxu0 %v284
        %472 = vmatmul.mubr.f32.gmra.mrb[0].mxu0 %v283
        %v473 = vpop.f32.mrb[0].mxu0
        %v474 = vadd.f32 %v376, %v473
        %v475 = vpop.f32.mrb[0].mxu0
        %v476 = vadd.f32 %v380, %v475
        %477 = vmatprep.mubr.f32.mxu0 %v286
        %478 = vmatmul.mubr.f32.gmra.mrb[0].mxu0 %v285
        %v479 = vpop.f32.mrb[0].mxu0
        %v480 = vadd.f32 %v376, %v479
        %v481 = vpop.f32.mrb[0].mxu0
        %v482 = vadd.f32 %v380, %v481
        %483 = vmatprep.mubr.f32.mxu0 %v288
        %484 = vmatmul.mubr.f32.gmra.mrb[0].mxu0 %v287
        %v485 = vpop.f32.mrb[0].mxu0
        %v486 = vadd.f32 %v376, %v485
        %v487 = vpop.f32.mrb[0].mxu0
        %v488 = vadd.f32 %v380, %v487
        %489 = vmatprep.mubr.f32.mxu0 %v290
        %490 = vmatmul.mubr.f32.gmra.mrb[0].mxu0 %v289
        %v491 = vpop.f32.mrb[0].mxu0
        %v492 = vadd.f32 %v376, %v491
        %v493 = vpop.f32.mrb[0].mxu0
        %v494 = vadd.f32 %v380, %v493
        %495 = vmatprep.mubr.f32.mxu0 %v292
        %496 = vmatmul.mubr.f32.gmra.mrb[0].mxu0 %v291
        %v497 = vpop.f32.mrb[0].mxu0
        %v498 = vadd.f32 %v376, %v497
        %v499 = vpop.f32.mrb[0].mxu0
        %v500 = vadd.f32 %v380, %v499
        %501 = vmatprep.mubr.f32.mxu0 %v294
        %502 = vmatmul.mubr.f32.gmra.mrb[0].mxu0 %v293
        %v503 = vpop.f32.mrb[0].mxu0
        %v504 = vadd.f32 %v376, %v503
        %v505 = vpop.f32.mrb[0].mxu0
        %v506 = vadd.f32 %v380, %v505
        %507 = vmatprep.mubr.f32.mxu0 %v296
        %508 = vmatmul.mubr.f32.gmra.mrb[0].mxu0 %v295
        %v509 = vpop.f32.mrb[0].mxu0
        %v510 = vadd.f32 %v376, %v509
        %v511 = vpop.f32.mrb[0].mxu0
        %v512 = vadd.f32 %v380, %v511
        %513 = vmatprep.mubr.f32.mxu0 %v298
        %514 = vmatmul.mubr.f32.gmra.mrb[0].mxu0 %v297
        %v515 = vpop.f32.mrb[0].mxu0
        %v516 = vadd.f32 %v376, %v515
        %v517 = vpop.f32.mrb[0].mxu0
        %v518 = vadd.f32 %v380, %v517
        %519 = vmatprep.mubr.f32.mxu0 %v300
        %520 = vmatmul.mubr.f32.gmra.mrb[0].mxu0 %v299
        %v521 = vpop.f32.mrb[0].mxu0
        %v522 = vadd.f32 %v376, %v521
        %v523 = vpop.f32.mrb[0].mxu0
        %v524 = vadd.f32 %v380, %v523
        %525 = vmatprep.mubr.f32.mxu0 %v302
        %526 = vmatmul.mubr.f32.gmra.mrb[0].mxu0 %v301
        %v527 = vpop.f32.mrb[0].mxu0
        %v528 = vadd.f32 %v376, %v527
        %v529 = vpop.f32.mrb[0].mxu0
        %v530 = vadd.f32 %v380, %v529
        %531 = vmatprep.mubr.f32.mxu0 %v304
        %532 = vmatmul.mubr.f32.gmra.mrb[0].mxu0 %v303
        %v533 = vpop.f32.mrb[0].mxu0
        %v534 = vadd.f32 %v376, %v533
        %v535 = vpop.f32.mrb[0].mxu0
        %v536 = vadd.f32 %v380, %v535
        %537 = vmatprep.mubr.f32.mxu0 %v306
        %538 = vmatmul.mubr.f32.gmra.mrb[0].mxu0 %v305
        %v539 = vpop.f32.mrb[0].mxu0
        %v540 = vadd.f32 %v376, %v539
        %v541 = vpop.f32.mrb[0].mxu0
        %v542 = vadd.f32 %v380, %v541
        %543 = vdwg.mxu0
        %v544 = vmax.f32 %v450, 0.0
        %v545 = vmax.f32 %v452, 0.0
        %v546 = vmax.f32 %v456, 0.0
        %v547 = vmax.f32 %v458, 0.0
        %v548 = vmax.f32 %v462, 0.0
        %v549 = vmax.f32 %v464, 0.0
        %v550 = vmax.f32 %v468, 0.0
        %v551 = vmax.f32 %v470, 0.0
        %v552 = vmax.f32 %v474, 0.0
        %v553 = vmax.f32 %v476, 0.0
        %v554 = vmax.f32 %v480, 0.0
        %v555 = vmax.f32 %v482, 0.0
        %v556 = vmax.f32 %v486, 0.0
        %v557 = vmax.f32 %v488, 0.0
        %v558 = vmax.f32 %v492, 0.0
        %v559 = vmax.f32 %v494, 0.0
        %v560 = vmax.f32 %v498, 0.0
        %v561 = vmax.f32 %v500, 0.0
        %v562 = vmax.f32 %v504, 0.0
        %v563 = vmax.f32 %v506, 0.0
        %v564 = vmax.f32 %v510, 0.0
        %v565 = vmax.f32 %v512, 0.0
        %v566 = vmax.f32 %v516, 0.0
        %v567 = vmax.f32 %v518, 0.0
        %v568 = vmax.f32 %v522, 0.0
        %v569 = vmax.f32 %v524, 0.0
        %v570 = vmax.f32 %v528, 0.0
        %v571 = vmax.f32 %v530, 0.0
        %v572 = vmax.f32 %v534, 0.0
        %v573 = vmax.f32 %v536, 0.0
        %v574 = vmax.f32 %v540, 0.0
        %v575 = vmax.f32 %v542, 0.0
        %v576 = vld [vmem:[#allocation7] sm:$0xff]
        %v577 = vld [vmem:[#allocation7 + $0x8] sm:$0xff]
        %v578 = vld [vmem:[#allocation7 + $0x10] sm:$0xff]
        %v579 = vld [vmem:[#allocation7 + $0x18] sm:$0xff]
        %v580 = vld [vmem:[#allocation7 + $0x20] sm:$0xff]
        %v581 = vld [vmem:[#allocation7 + $0x28] sm:$0xff]
        %v582 = vld [vmem:[#allocation7 + $0x30] sm:$0xff]
        %v583 = vld [vmem:[#allocation7 + $0x38] sm:$0xff]
        %v584 = vld [vmem:[#allocation7 + $0x40] sm:$0xff]
        %v585 = vld [vmem:[#allocation7 + $0x48] sm:$0xff]
        %v586 = vld [vmem:[#allocation7 + $0x50] sm:$0xff]
        %v587 = vld [vmem:[#allocation7 + $0x58] sm:$0xff]
        %v588 = vld [vmem:[#allocation7 + $0x60] sm:$0xff]
        %v589 = vld [vmem:[#allocation7 + $0x68] sm:$0xff]
        %v590 = vld [vmem:[#allocation7 + $0x70] sm:$0xff]
        %v591 = vld [vmem:[#allocation7 + $0x78] sm:$0xff]
        %v592 = vld [vmem:[#allocation7 + $0x80] sm:$0xff]
        %v593 = vld [vmem:[#allocation7 + $0x88] sm:$0xff]
        %v594 = vld [vmem:[#allocation7 + $0x90] sm:$0xff]
        %v595 = vld [vmem:[#allocation7 + $0x98] sm:$0xff]
        %v596 = vld [vmem:[#allocation7 + $0xa0] sm:$0xff]
        %v597 = vld [vmem:[#allocation7 + $0xa8] sm:$0xff]
        %v598 = vld [vmem:[#allocation7 + $0xb0] sm:$0xff]
        %v599 = vld [vmem:[#allocation7 + $0xb8] sm:$0xff]
        %v600 = vld [vmem:[#allocation7 + $0xc0] sm:$0xff]
        %v601 = vld [vmem:[#allocation7 + $0xc8] sm:$0xff]
        %v602 = vld [vmem:[#allocation7 + $0xd0] sm:$0xff]
        %v603 = vld [vmem:[#allocation7 + $0xd8] sm:$0xff]
        %v604 = vld [vmem:[#allocation7 + $0xe0] sm:$0xff]
        %v605 = vld [vmem:[#allocation7 + $0xe8] sm:$0xff]
        %v606 = vld [vmem:[#allocation7 + $0xf0] sm:$0xff]
        %v607 = vld [vmem:[#allocation7 + $0xf8] sm:$0xff]
        %v608 = vld [vmem:[%s4] sm:$0x1]
        %v610 = vlaneseq
        %v611 = vshrl.u32 %v610, 7
        %v612 = vsub.s32 0, %v611
        %v613 = vrot.slane %v608, %v612
        %615 = vmatprep.subr.mxu0 0.0
        %616 = vmatpush1.msra.mxu0 %v576
        %617 = vmatprep.subr.mxu0 0.0
        %618 = vmatpush1.msra.mxu0 %v577
        %619 = vmatprep.subr.mxu0 0.0
        %620 = vmatpush1.msra.mxu0 %v578
        %621 = vmatprep.subr.mxu0 0.0
        %622 = vmatpush1.msra.mxu0 %v579
        %623 = vmatprep.subr.mxu0 0.0
        %624 = vmatpush1.msra.mxu0 %v580
        %625 = vmatprep.subr.mxu0 0.0
        %626 = vmatpush1.msra.mxu0 %v581
        %627 = vmatprep.subr.mxu0 0.0
        %628 = vmatpush1.msra.mxu0 %v582
        %629 = vmatprep.subr.mxu0 0.0
        %630 = vmatpush1.msra.mxu0 %v583
        %631 = vmatprep.subr.mxu0 0.0
        %632 = vmatpush1.msra.mxu0 %v584
        %633 = vmatprep.subr.mxu0 0.0
        %634 = vmatpush1.msra.mxu0 %v585
        %635 = vmatprep.subr.mxu0 0.0
        %636 = vmatpush1.msra.mxu0 %v586
        %637 = vmatprep.subr.mxu0 0.0
        %638 = vmatpush1.msra.mxu0 %v587
        %639 = vmatprep.subr.mxu0 0.0
        %640 = vmatpush1.msra.mxu0 %v588
        %641 = vmatprep.subr.mxu0 0.0
        %642 = vmatpush1.msra.mxu0 %v589
        %643 = vmatprep.subr.mxu0 0.0
        %644 = vmatpush1.msra.mxu0 %v590
        %645 = vmatprep.subr.mxu0 0.0
        %646 = vmatpush1.msra.mxu0 %v591
        %647 = vmatprep.subr.mxu0 0.0
        %648 = vmatpush1.msra.mxu0 %v592
        %649 = vmatprep.subr.mxu0 0.0
        %650 = vmatpush1.msra.mxu0 %v593
        %651 = vmatprep.subr.mxu0 0.0
        %652 = vmatpush1.msra.mxu0 %v594
        %653 = vmatprep.subr.mxu0 0.0
        %654 = vmatpush1.msra.mxu0 %v595
        %655 = vmatprep.subr.mxu0 0.0
        %656 = vmatpush1.msra.mxu0 %v596
        %657 = vmatprep.subr.mxu0 0.0
        %658 = vmatpush1.msra.mxu0 %v597
        %659 = vmatprep.subr.mxu0 0.0
        %660 = vmatpush1.msra.mxu0 %v598
        %661 = vmatprep.subr.mxu0 0.0
        %662 = vmatpush1.msra.mxu0 %v599
        %663 = vmatprep.subr.mxu0 0.0
        %664 = vmatpush1.msra.mxu0 %v600
        %665 = vmatprep.subr.mxu0 0.0
        %666 = vmatpush1.msra.mxu0 %v601
        %667 = vmatprep.subr.mxu0 0.0
        %668 = vmatpush1.msra.mxu0 %v602
        %669 = vmatprep.subr.mxu0 0.0
        %670 = vmatpush1.msra.mxu0 %v603
        %671 = vmatprep.subr.mxu0 0.0
        %672 = vmatpush1.msra.mxu0 %v604
        %673 = vmatprep.subr.mxu0 0.0
        %674 = vmatpush1.msra.mxu0 %v605
        %675 = vmatprep.subr.mxu0 0.0
        %676 = vmatpush1.msra.mxu0 %v606
        %677 = vmatprep.subr.mxu0 0.0
        %678 = vmatpush1.msra.mxu0 %v607
        %679 = vmatprep.mubr.f32.mxu0 %v545
        %680 = vmatmul.mubr.f32.gmra.mrb[0].mxu0 %v544
        %v681 = vpop.f32.mrb[0].mxu0
        %v682 = vadd.f32 %v613, %v681
        %v683 = vpop.f32.mrb[0].mxu0
        %684 = vmatprep.mubr.f32.mxu0 %v547
        %685 = vmatmul.mubr.f32.gmra.mrb[0].mxu0 %v546
        %v686 = vpop.f32.mrb[0].mxu0
        %v687 = vadd.f32 %v613, %v686
        %v688 = vpop.f32.mrb[0].mxu0
        %689 = vmatprep.mubr.f32.mxu0 %v549
        %690 = vmatmul.mubr.f32.gmra.mrb[0].mxu0 %v548
        %v691 = vpop.f32.mrb[0].mxu0
        %v692 = vadd.f32 %v613, %v691
        %v693 = vpop.f32.mrb[0].mxu0
        %694 = vmatprep.mubr.f32.mxu0 %v551
        %695 = vmatmul.mubr.f32.gmra.mrb[0].mxu0 %v550
        %v696 = vpop.f32.mrb[0].mxu0
        %v697 = vadd.f32 %v613, %v696
        %v698 = vpop.f32.mrb[0].mxu0
        %699 = vmatprep.mubr.f32.mxu0 %v553
        %700 = vmatmul.mubr.f32.gmra.mrb[0].mxu0 %v552
        %v701 = vpop.f32.mrb[0].mxu0
        %v702 = vadd.f32 %v613, %v701
        %v703 = vpop.f32.mrb[0].mxu0
        %704 = vmatprep.mubr.f32.mxu0 %v555
        %705 = vmatmul.mubr.f32.gmra.mrb[0].mxu0 %v554
        %v706 = vpop.f32.mrb[0].mxu0
        %v707 = vadd.f32 %v613, %v706
        %v708 = vpop.f32.mrb[0].mxu0
        %709 = vmatprep.mubr.f32.mxu0 %v557
        %710 = vmatmul.mubr.f32.gmra.mrb[0].mxu0 %v556
        %v711 = vpop.f32.mrb[0].mxu0
        %v712 = vadd.f32 %v613, %v711
        %v713 = vpop.f32.mrb[0].mxu0
        %714 = vmatprep.mubr.f32.mxu0 %v559
        %715 = vmatmul.mubr.f32.gmra.mrb[0].mxu0 %v558
        %v716 = vpop.f32.mrb[0].mxu0
        %v717 = vadd.f32 %v613, %v716
        %v718 = vpop.f32.mrb[0].mxu0
        %719 = vmatprep.mubr.f32.mxu0 %v561
        %720 = vmatmul.mubr.f32.gmra.mrb[0].mxu0 %v560
        %v721 = vpop.f32.mrb[0].mxu0
        %v722 = vadd.f32 %v613, %v721
        %v723 = vpop.f32.mrb[0].mxu0
        %724 = vmatprep.mubr.f32.mxu0 %v563
        %725 = vmatmul.mubr.f32.gmra.mrb[0].mxu0 %v562
        %v726 = vpop.f32.mrb[0].mxu0
        %v727 = vadd.f32 %v613, %v726
        %v728 = vpop.f32.mrb[0].mxu0
        %729 = vmatprep.mubr.f32.mxu0 %v565
        %730 = vmatmul.mubr.f32.gmra.mrb[0].mxu0 %v564
        %v731 = vpop.f32.mrb[0].mxu0
        %v732 = vadd.f32 %v613, %v731
        %v733 = vpop.f32.mrb[0].mxu0
        %734 = vmatprep.mubr.f32.mxu0 %v567
        %735 = vmatmul.mubr.f32.gmra.mrb[0].mxu0 %v566
        %v736 = vpop.f32.mrb[0].mxu0
        %v737 = vadd.f32 %v613, %v736
        %v738 = vpop.f32.mrb[0].mxu0
        %739 = vmatprep.mubr.f32.mxu0 %v569
        %740 = vmatmul.mubr.f32.gmra.mrb[0].mxu0 %v568
        %v741 = vpop.f32.mrb[0].mxu0
        %v742 = vadd.f32 %v613, %v741
        %v743 = vpop.f32.mrb[0].mxu0
        %744 = vmatprep.mubr.f32.mxu0 %v571
        %745 = vmatmul.mubr.f32.gmra.mrb[0].mxu0 %v570
        %v746 = vpop.f32.mrb[0].mxu0
        %v747 = vadd.f32 %v613, %v746
        %v748 = vpop.f32.mrb[0].mxu0
        %749 = vmatprep.mubr.f32.mxu0 %v573
        %750 = vmatmul.mubr.f32.gmra.mrb[0].mxu0 %v572
        %v751 = vpop.f32.mrb[0].mxu0
        %v752 = vadd.f32 %v613, %v751
        %v753 = vpop.f32.mrb[0].mxu0
        %754 = vmatprep.mubr.f32.mxu0 %v575
        %755 = vmatmul.mubr.f32.gmra.mrb[0].mxu0 %v574
        %v756 = vpop.f32.mrb[0].mxu0
        %v757 = vadd.f32 %v613, %v756
        %v758 = vpop.f32.mrb[0].mxu0
        %759 = vdwg.mxu0
        %v760 = vmul.f32 %v682, %v682
        %v761 = vmul.f32 %v687, %v687
        %v762 = vmul.f32 %v692, %v692
        %v763 = vmul.f32 %v697, %v697
        %v764 = vmul.f32 %v702, %v702
        %v765 = vmul.f32 %v707, %v707
        %v766 = vmul.f32 %v712, %v712
        %v767 = vmul.f32 %v717, %v717
        %v768 = vmul.f32 %v722, %v722
        %v769 = vmul.f32 %v727, %v727
        %v770 = vmul.f32 %v732, %v732
        %v771 = vmul.f32 %v737, %v737
        %v772 = vmul.f32 %v742, %v742
        %v773 = vmul.f32 %v747, %v747
        %v774 = vmul.f32 %v752, %v752
        %v775 = vmul.f32 %v757, %v757
        %776 = vadd.xlane.f32.xlu0 %v760
        %v777 = vpop.xlane.xlu0 %776
        %778 = vadd.xlane.f32.xlu0 %v761
        %v779 = vpop.xlane.xlu0 %778
        %780 = vadd.xlane.f32.xlu0 %v762
        %v781 = vpop.xlane.xlu0 %780
        %782 = vadd.xlane.f32.xlu0 %v763
        %v783 = vpop.xlane.xlu0 %782
        %784 = vadd.xlane.f32.xlu0 %v764
        %v785 = vpop.xlane.xlu0 %784
        %786 = vadd.xlane.f32.xlu0 %v765
        %v787 = vpop.xlane.xlu0 %786
        %788 = vadd.xlane.f32.xlu0 %v766
        %v789 = vpop.xlane.xlu0 %788
        %790 = vadd.xlane.f32.xlu0 %v767
        %v791 = vpop.xlane.xlu0 %790
        %792 = vadd.xlane.f32.xlu0 %v768
        %v793 = vpop.xlane.xlu0 %792
        %794 = vadd.xlane.f32.xlu0 %v769
        %v795 = vpop.xlane.xlu0 %794
        %796 = vadd.xlane.f32.xlu0 %v770
        %v797 = vpop.xlane.xlu0 %796
        %798 = vadd.xlane.f32.xlu0 %v771
        %v799 = vpop.xlane.xlu0 %798
        %800 = vadd.xlane.f32.xlu0 %v772
        %v801 = vpop.xlane.xlu0 %800
        %802 = vadd.xlane.f32.xlu0 %v773
        %v803 = vpop.xlane.xlu0 %802
        %804 = vadd.xlane.f32.xlu0 %v774
        %v805 = vpop.xlane.xlu0 %804
        %806 = vadd.xlane.f32.xlu0 %v775
        %v807 = vpop.xlane.xlu0 %806
        %v808 = vrsqrt.pop %v777
        %v809 = vrsqrt.pop %v779
        %v810 = vrsqrt.pop %v781
        %v811 = vrsqrt.pop %v783
        %v812 = vrsqrt.pop %v785
        %v813 = vrsqrt.pop %v787
        %v814 = vrsqrt.pop %v789
        %v815 = vrsqrt.pop %v791
        %v816 = vrsqrt.pop %v793
        %v817 = vrsqrt.pop %v795
        %v818 = vrsqrt.pop %v797
        %v819 = vrsqrt.pop %v799
        %v820 = vrsqrt.pop %v801
        %v821 = vrsqrt.pop %v803
        %v822 = vrsqrt.pop %v805
        %v823 = vrsqrt.pop %v807
        %v824 = vmul.f32 %v682, %v808
        %v825 = vmul.f32 %v687, %v809
        %v826 = vmul.f32 %v692, %v810
        %v827 = vmul.f32 %v697, %v811
        %v828 = vmul.f32 %v702, %v812
        %v829 = vmul.f32 %v707, %v813
        %v830 = vmul.f32 %v712, %v814
        %v831 = vmul.f32 %v717, %v815
        %v832 = vmul.f32 %v722, %v816
        %v833 = vmul.f32 %v727, %v817
        %v834 = vmul.f32 %v732, %v818
        %v835 = vmul.f32 %v737, %v819
        %v836 = vmul.f32 %v742, %v820
        %v837 = vmul.f32 %v747, %v821
        %v838 = vmul.f32 %v752, %v822
        %v839 = vmul.f32 %v757, %v823
        %840 = vst [vmem:[%s272] sm:$0xff] %v824
        %841 = vst [vmem:[%s272 + $0x8] sm:$0xff] %v825
        %842 = vst [vmem:[%s272 + $0x10] sm:$0xff] %v826
        %843 = vst [vmem:[%s272 + $0x18] sm:$0xff] %v827
        %844 = vst [vmem:[%s272 + $0x20] sm:$0xff] %v828
        %845 = vst [vmem:[%s272 + $0x28] sm:$0xff] %v829
        %846 = vst [vmem:[%s272 + $0x30] sm:$0xff] %v830
        %847 = vst [vmem:[%s272 + $0x38] sm:$0xff] %v831
        %848 = vst [vmem:[%s272 + $0x40] sm:$0xff] %v832
        %849 = vst [vmem:[%s272 + $0x48] sm:$0xff] %v833
        %850 = vst [vmem:[%s272 + $0x50] sm:$0xff] %v834
        %851 = vst [vmem:[%s272 + $0x58] sm:$0xff] %v835
        %852 = vst [vmem:[%s272 + $0x60] sm:$0xff] %v836
        %853 = vst [vmem:[%s272 + $0x68] sm:$0xff] %v837
        %854 = vst [vmem:[%s272 + $0x70] sm:$0xff] %v838
        %855 = vst [vmem:[%s272 + $0x78] sm:$0xff] %v839
        %s856 = sand.u32 %s141, 1
        %s857 = scalar_lea.sflag [#allocation4], %s856
        %s858 = sand.u32 %s141, 1
        %s859 = smul.addr %s858, 128
        %s860 = scalar_lea.vmem [#allocation8], %s859
        // Predicated region
        $region53: #{tpu_custom_call.1} parent=39 // pred_check
          %p861 = pneg %p151
        $region54: #{tpu_custom_call.1} parent=39 // pred_check_branch
          %863 = sbr.rel (%p861) target = $region56
        $region55: #{tpu_custom_call.1} parent=39 // pred_region
          %s864 = smul.u32 16, %s23
          %s866 = ssub.s32 2048, 2048
          %867 = vsyncadd %s857, %s866
          %s868 = smul.addr %s864, 128
          %s869 = scalar_lea.hbm %s5, %s868
          %s870 = sshll.u32 %s860, 4
          %s871 = int_to_ptr.vmem [resolvable:$true] %s870
          %876 = dma.vmem_to_hbm [thread:$0]  %s871, 2048, %s869, %s857, 128, 128, 8
        $region56: #{tpu_custom_call.1} parent=39 // pred_fallthru
          _
      $region40: #{tpu_custom_call.1} parent=5 // pred_fallthru
        _
      %p877 = scmp.le.s32.totalorder 2, %s18
      // Predicated region
      $region57: #{tpu_custom_call.1} parent=5 // pred_check
        %p878 = pneg %p877
      $region58: #{tpu_custom_call.1} parent=5 // pred_check_branch
        %880 = sbr.rel (%p878) target = $region60
      $region59: #{tpu_custom_call.1} parent=5 // pred_region
        %s881 = ssub.s32 %s18, 2
        // Predicated region
        $region61: #{tpu_custom_call.1} parent=59 // pred_check
          %p882 = pneg %p157
        $region62: #{tpu_custom_call.1} parent=59 // pred_check_branch
          %884 = sbr.rel (%p882) target = $region64
        $region63: #{tpu_custom_call.1} parent=59 // pred_region
          %s885 = sand.u32 %s142, 1
          %s886 = scalar_lea.sflag [#allocation4], %s885
          %s887 = sand.u32 %s142, 1
          %s888 = smul.addr %s887, 128
          %s889 = scalar_lea.vmem [#allocation8], %s888
          %890 = dma.done %s886, 2048
        $region64: #{tpu_custom_call.1} parent=59 // pred_fallthru
          _
      $region60: #{tpu_custom_call.1} parent=5 // pred_fallthru
        _
    $region6: #{tpu_custom_call.1} parent=1 // loop_footer
      %s22 = sadd.s32 1, %s18
    $region7: #{tpu_custom_call.1} parent=1 // loop_footer_branch
      %17 = sbr.rel target = $region3
    $region8: #{tpu_custom_call.1} parent=1 // loop_exit
      _
    %891 = vsyncpa [#allocation3], 1
    %s892 = scalar_lea.sflag [#allocation3], 1
    %893 = vsyncpa %s892, 1
    %894 = vsyncpa [#allocation6], 1
    %895 = vsyncpa [#allocation4], 1
    %s896 = scalar_lea.sflag [#allocation4], 1
    %897 = vsyncpa %s896, 1

</llo_original>
